<compile_context>
chip_gen: v7x
topology: tpu7x:2x2x1
jax: 0.10.0
libtpu: 0.0.40
codegen_flags: <defaults>
</compile_context>

<pallas_src>
import jax
import jax.numpy as jnp
from jax.experimental import pallas as pl
from jax.experimental.pallas import tpu as pltpu

_LANE = 128     # TPU vreg lane width (last dim)
_SUBLANE = 8    # f32 sublane count (second-to-last dim)


def _round_up(x, m):
    return ((x + m - 1) // m) * m


def _make_mlp_kernel(num_layers: int, out_dim: int, last_width: int, cast_bf16: bool):
    """Fused MLP kernel: (x_ref, w0, b0, ..., w_{L-1}, b_{L-1}, o_ref)."""

    def kernel(*refs):
        x_ref = refs[0]
        o_ref = refs[-1]
        param_refs = refs[1:-1]           # alternating (w, b), lane-padded

        h = x_ref[...]                    # f32 (block_batch, in_dim) — unpadded lanes
        for i in range(num_layers):
            w = param_refs[2 * i][...]    # (K_i, N_i_pad)
            b = param_refs[2 * i + 1][...]  # (1, N_i_pad)
            if cast_bf16:
                # 2x MXU throughput + half the vreg/VMEM activation traffic on
                # v6e/v7x once widths are >=256; accumulation stays f32.
                h = jnp.dot(h.astype(jnp.bfloat16), w.astype(jnp.bfloat16),
                            preferred_element_type=jnp.float32) + b
            else:
                h = jnp.dot(h, w, preferred_element_type=jnp.float32) + b
            if i != num_layers - 1:       # ReLU on all but the final layer
                h = jnp.maximum(h, 0.0)
        if last_width != out_dim:         # drop lane padding before the store:
            h = h[:, :out_dim]            # writeback is out_dim-wide, not 128-wide
        o_ref[...] = h.astype(o_ref.dtype)

    return kernel


def make_mlp_forward(weights, biases, *, use_bf16_matmul=None):
    """Build a fused-MLP forward fn; pads params ONCE (hoisted out of the call path).

    Args:
      weights: list of W_t arrays (in_features, out_features) — transposed
               from PyTorch's (out, in) convention.
      biases:  list of b arrays (out_features,).
      use_bf16_matmul: force bf16 MXU inputs; default: auto (on when any padded
               feature width >= 256).
    Returns:
      forward(x, block_batch=None) -> (batch, out_dim) array.
    """
    n_layers = len(weights)
    in_dim = weights[0].shape[0]
    out_dim = weights[-1].shape[1]
    dims = [in_dim] + [w.shape[1] for w in weights]

    # Layer-0 contraction dim stays = in_dim (x is unpadded); every layer's
    # OUTPUT width is padded to a 128 multiple so matmuls / intermediates are
    # lane- and MXU-dense.  Zero-padded rows/cols + zero bias keep padded
    # lanes exactly 0 through every ReLU, so results are exact after the
    # in-kernel slice.
    pdims = [in_dim] + [_round_up(d, _LANE) for d in dims[1:]]

    w_p, b_p = [], []
    for i, (w, b) in enumerate(zip(weights, biases)):
        fi, fo = w.shape
        w_p.append(jnp.pad(jnp.asarray(w, jnp.float32),
                           ((0, pdims[i] - fi), (0, pdims[i + 1] - fo))))
        b2 = jnp.reshape(jnp.asarray(b, jnp.float32), (1, fo))
        b_p.append(jnp.pad(b2, ((0, 0), (0, pdims[i + 1] - fo))))

    if use_bf16_matmul is None:
        use_bf16_matmul = max(pdims) >= 256

    kernel = _make_mlp_kernel(n_layers, out_dim, pdims[-1], use_bf16_matmul)

    # Weights/biases use constant index_maps -> held resident across grid steps.
    param_specs, params_flat = [], []
    for w, b in zip(w_p, b_p):
        param_specs.append(pl.BlockSpec(w.shape, lambda i: (0, 0)))
        param_specs.append(pl.BlockSpec(b.shape, lambda i: (0, 0)))
        params_flat.extend([w, b])
    param_bytes = sum(int(p.size) for p in params_flat) * 4

    def forward(x, block_batch=None):
        batch, xin = x.shape
        assert xin == in_dim, (xin, in_dim)
        x32 = x.astype(jnp.float32)

        # ---- Batch tile: multiple of 8; >=2 grid steps when batch allows so
        # ("parallel",) can shard across v7x's 2 TensorCores. -----------------
        if block_batch is None:
            block_batch = min(1024, _round_up(batch, _SUBLANE))
        block_batch = max(_SUBLANE, _round_up(int(block_batch), _SUBLANE))
        if batch > _SUBLANE and pl.cdiv(batch, block_batch) < 2:
            block_batch = _round_up(pl.cdiv(batch, 2), _SUBLANE)
        grid = (pl.cdiv(batch, block_batch),)   # non-divisible grid: no x pad copy

        # ---- VMEM budget: only raise the scoped limit if actually needed ----
        f32b = 4
        vmem_est = (2 * block_batch * (in_dim + out_dim) * f32b   # 2x-buffered x/out tiles
                    + 2 * param_bytes                             # resident params
                    + 4 * block_batch * max(pdims) * f32b)        # intermediate headroom
        vmem_limit = None
        if vmem_est > 12 * 1024 * 1024:        # beyond v5e's 16 MiB scoped default
            vmem_limit = min(_round_up(int(vmem_est * 3 // 2), 1024),
                             48 * 1024 * 1024)  # safe cap for v7x's 64 MiB physical

        flops = 2 * batch * sum(pdims[i] * pdims[i + 1] for i in range(n_layers))
        cost = pl.CostEstimate(
            flops=flops, transcendentals=0,
            bytes_accessed=(batch * in_dim + batch * out_dim) * f32b + param_bytes)

        in_specs = [pl.BlockSpec((block_batch, in_dim), lambda i: (i, 0))] + param_specs
        out_spec = pl.BlockSpec((block_batch, out_dim), lambda i: (i, 0))

        return pl.pallas_call(
            kernel,
            out_shape=jax.ShapeDtypeStruct((batch, out_dim), x32.dtype),
            grid=grid,
            in_specs=in_specs,
            out_specs=out_spec,
            compiler_params=pltpu.CompilerParams(
                dimension_semantics=("parallel",),   # batch tiles are independent
                vmem_limit_bytes=vmem_limit),
            cost_estimate=cost,
        )(x32, *params_flat)

    return forward


def neural_network_forward(x, weights, biases, *, block_batch=None):
    """Convenience one-shot wrapper (pads params per call; prefer make_mlp_forward)."""
    return make_mlp_forward(weights, biases)(x, block_batch=block_batch)


def init_params(key, input_dim, num_hidden_neurons, output_dim=1):
    """Deterministic init mirroring nn.Linear default (uniform(-1/sqrt(in), 1/sqrt(in)))."""
    dims = [input_dim] + list(num_hidden_neurons) + [output_dim]
    weights, biases = [], []
    for i in range(len(dims) - 1):
        fan_in, fan_out = dims[i], dims[i + 1]
        key, kw, kb = jax.random.split(key, 3)
        bound = 1.0 / jnp.sqrt(jnp.float32(fan_in))
        # PyTorch stores (out, in); build that way then transpose to (in, out).
        w_pt = jax.random.uniform(kw, (fan_out, fan_in), jnp.float32, -bound, bound)
        b_pt = jax.random.uniform(kb, (fan_out,), jnp.float32, -bound, bound)
        weights.append(jnp.transpose(w_pt))   # (in, out)
        biases.append(b_pt)                   # (out,)
    return weights, biases


def reference_forward(x, weights, biases):
    """Pure-JAX reference implementing the same nn.Sequential semantics."""
    h = x
    n = len(weights)
    for i, (w, b) in enumerate(zip(weights, biases)):
        h = h @ w + b
        if i != n - 1:
            h = jnp.maximum(h, 0.0)
    return h


if __name__ == "__main__":
    key = jax.random.PRNGKey(0)

    # Small tabular-regression shapes; batch deliberately ragged (not a
    # multiple of 8 or of the tile) to exercise the non-divisible-grid path.
    batch = 200
    input_dim = 16
    num_hidden_neurons = [32, 64]
    output_dim = 1

    key, kx = jax.random.split(key)
    x = jax.random.normal(kx, (batch, input_dim), jnp.float32)
    weights, biases = init_params(key, input_dim, num_hidden_neurons, output_dim)

    forward = make_mlp_forward(weights, biases)   # params padded once, here
    ref = reference_forward(x, weights, biases)

    # Explicit small tile -> 4-step grid with a partial final block.
    out = jax.block_until_ready(forward(x, block_batch=64))
    assert out.shape == (batch, output_dim), out.shape
    assert jnp.allclose(out, ref, atol=2e-4, rtol=2e-4), (
        f"mismatch: max abs err = {jnp.max(jnp.abs(out - ref))}"
    )

    # Default tiling -> exercises the >=2-step (v7x dual-TC) split logic.
    out2 = jax.block_until_ready(forward(x))
    assert out2.shape == (batch, output_dim), out2.shape
    assert jnp.allclose(out2, ref, atol=2e-4, rtol=2e-4), (
        f"mismatch (default tile): max abs err = {jnp.max(jnp.abs(out2 - ref))}"
    )

    print("KERNEL_OK")
</pallas_src>

<mosaic_0001>
module attributes {stable_mosaic.version = 11 : i64} {
  func.func @kernel(%arg0: i32, %arg1: memref<64x16xf32, #tpu.memory_space<vmem>>, %arg2: memref<16x128xf32, #tpu.memory_space<vmem>>, %arg3: memref<1x128xf32, #tpu.memory_space<vmem>>, %arg4: memref<128x128xf32, #tpu.memory_space<vmem>>, %arg5: memref<1x128xf32, #tpu.memory_space<vmem>>, %arg6: memref<128x128xf32, #tpu.memory_space<vmem>>, %arg7: memref<1x128xf32, #tpu.memory_space<vmem>>, %arg8: memref<64x1xf32, #tpu.memory_space<vmem>>) attributes {dimension_semantics = [#tpu.dimension_semantics<parallel>], iteration_bounds = array<i64: 4>, scalar_prefetch = 0 : i64, scratch_operands = 0 : i64, tpu.core_type = #tpu.core_type<tc>, window_params = [{transform_indices = @transform_0, window_bounds = array<i64: 64, 16>}, {pipeline_mode = #tpu.pipeline_mode<synchronous>, transform_indices = @transform_1, window_bounds = array<i64: 16, 128>}, {pipeline_mode = #tpu.pipeline_mode<synchronous>, transform_indices = @transform_2, window_bounds = array<i64: 1, 128>}, {pipeline_mode = #tpu.pipeline_mode<synchronous>, transform_indices = @transform_3, window_bounds = array<i64: 128, 128>}, {pipeline_mode = #tpu.pipeline_mode<synchronous>, transform_indices = @transform_4, window_bounds = array<i64: 1, 128>}, {pipeline_mode = #tpu.pipeline_mode<synchronous>, transform_indices = @transform_5, window_bounds = array<i64: 128, 128>}, {pipeline_mode = #tpu.pipeline_mode<synchronous>, transform_indices = @transform_6, window_bounds = array<i64: 1, 128>}, {transform_indices = @transform_7, window_bounds = array<i64: 64, 1>}]} {
    %c0 = arith.constant 0 : index
    %c0_0 = arith.constant 0 : index
    %0 = vector.load %arg1[%c0, %c0_0] : memref<64x16xf32, #tpu.memory_space<vmem>>, vector<64x16xf32>
    %c0_1 = arith.constant 0 : index
    %c0_2 = arith.constant 0 : index
    %1 = vector.load %arg2[%c0_1, %c0_2] : memref<16x128xf32, #tpu.memory_space<vmem>>, vector<16x128xf32>
    %c0_3 = arith.constant 0 : index
    %c0_4 = arith.constant 0 : index
    %2 = vector.load %arg3[%c0_3, %c0_4] : memref<1x128xf32, #tpu.memory_space<vmem>>, vector<1x128xf32>
    %cst = arith.constant dense<0.000000e+00> : vector<64x128xf32>
    %3 = tpu.matmul %0, %1, %cst {dimension_numbers = #tpu.dot_dimension_numbers<[1], [0], [0], [1], [0, 0, 1, 1], [], []>} : vector<64x16xf32>, vector<16x128xf32>, vector<64x128xf32> -> vector<64x128xf32>
    %4 = vector.broadcast %2 : vector<1x128xf32> to vector<64x128xf32>
    %5 = arith.addf %3, %4 : vector<64x128xf32>
    %cst_5 = arith.constant 0.000000e+00 : f32
    %6 = vector.broadcast %cst_5 : f32 to vector<64x128xf32>
    %7 = arith.maximumf %5, %6 : vector<64x128xf32>
    %c0_6 = arith.constant 0 : index
    %c0_7 = arith.constant 0 : index
    %8 = vector.load %arg4[%c0_6, %c0_7] : memref<128x128xf32, #tpu.memory_space<vmem>>, vector<128x128xf32>
    %c0_8 = arith.constant 0 : index
    %c0_9 = arith.constant 0 : index
    %9 = vector.load %arg5[%c0_8, %c0_9] : memref<1x128xf32, #tpu.memory_space<vmem>>, vector<1x128xf32>
    %cst_10 = arith.constant dense<0.000000e+00> : vector<64x128xf32>
    %10 = tpu.matmul %7, %8, %cst_10 {dimension_numbers = #tpu.dot_dimension_numbers<[1], [0], [0], [1], [0, 0, 1, 1], [], []>} : vector<64x128xf32>, vector<128x128xf32>, vector<64x128xf32> -> vector<64x128xf32>
    %11 = vector.broadcast %9 : vector<1x128xf32> to vector<64x128xf32>
    %12 = arith.addf %10, %11 : vector<64x128xf32>
    %cst_11 = arith.constant 0.000000e+00 : f32
    %13 = vector.broadcast %cst_11 : f32 to vector<64x128xf32>
    %14 = arith.maximumf %12, %13 : vector<64x128xf32>
    %c0_12 = arith.constant 0 : index
    %c0_13 = arith.constant 0 : index
    %15 = vector.load %arg6[%c0_12, %c0_13] : memref<128x128xf32, #tpu.memory_space<vmem>>, vector<128x128xf32>
    %c0_14 = arith.constant 0 : index
    %c0_15 = arith.constant 0 : index
    %16 = vector.load %arg7[%c0_14, %c0_15] : memref<1x128xf32, #tpu.memory_space<vmem>>, vector<1x128xf32>
    %cst_16 = arith.constant dense<0.000000e+00> : vector<64x128xf32>
    %17 = tpu.matmul %14, %15, %cst_16 {dimension_numbers = #tpu.dot_dimension_numbers<[1], [0], [0], [1], [0, 0, 1, 1], [], []>} : vector<64x128xf32>, vector<128x128xf32>, vector<64x128xf32> -> vector<64x128xf32>
    %18 = vector.broadcast %16 : vector<1x128xf32> to vector<64x128xf32>
    %19 = arith.addf %17, %18 : vector<64x128xf32>
    %20 = vector.extract_strided_slice %19 {offsets = [0, 0], sizes = [64, 1], strides = [1, 1]} : vector<64x128xf32> to vector<64x1xf32>
    %c0_17 = arith.constant 0 : index
    %c0_18 = arith.constant 0 : index
    %21 = vector.load %arg8[%c0_17, %c0_18] : memref<64x1xf32, #tpu.memory_space<vmem>>, vector<64x1xf32>
    tpu.vector_store %arg8[%c0_17, %c0_18], %20 {strides = array<i32>} : memref<64x1xf32, #tpu.memory_space<vmem>>, vector<64x1xf32>,
    return
  }
  func.func @transform_0(%arg0: i32) -> (i32, i32) {
    %c0_i32 = arith.constant 0 : i32
    %c0_i32_0 = arith.constant 0 : i32
    return %arg0, %c0_i32 : i32, i32
  }
  func.func @transform_1(%arg0: i32) -> (i32, i32) {
    %c0_i32 = arith.constant 0 : i32
    %c0_i32_0 = arith.constant 0 : i32
    %c0_i32_1 = arith.constant 0 : i32
    return %c0_i32, %c0_i32_0 : i32, i32
  }
  func.func @transform_2(%arg0: i32) -> (i32, i32) {
    %c0_i32 = arith.constant 0 : i32
    %c0_i32_0 = arith.constant 0 : i32
    %c0_i32_1 = arith.constant 0 : i32
    return %c0_i32, %c0_i32_0 : i32, i32
  }
  func.func @transform_3(%arg0: i32) -> (i32, i32) {
    %c0_i32 = arith.constant 0 : i32
    %c0_i32_0 = arith.constant 0 : i32
    %c0_i32_1 = arith.constant 0 : i32
    return %c0_i32, %c0_i32_0 : i32, i32
  }
  func.func @transform_4(%arg0: i32) -> (i32, i32) {
    %c0_i32 = arith.constant 0 : i32
    %c0_i32_0 = arith.constant 0 : i32
    %c0_i32_1 = arith.constant 0 : i32
    return %c0_i32, %c0_i32_0 : i32, i32
  }
  func.func @transform_5(%arg0: i32) -> (i32, i32) {
    %c0_i32 = arith.constant 0 : i32
    %c0_i32_0 = arith.constant 0 : i32
    %c0_i32_1 = arith.constant 0 : i32
    return %c0_i32, %c0_i32_0 : i32, i32
  }
  func.func @transform_6(%arg0: i32) -> (i32, i32) {
    %c0_i32 = arith.constant 0 : i32
    %c0_i32_0 = arith.constant 0 : i32
    %c0_i32_1 = arith.constant 0 : i32
    return %c0_i32, %c0_i32_0 : i32, i32
  }
  func.func @transform_7(%arg0: i32) -> (i32, i32) {
    %c0_i32 = arith.constant 0 : i32
    %c0_i32_0 = arith.constant 0 : i32
    return %arg0, %c0_i32 : i32, i32
  }
}

</mosaic_0001>

<llo_original>
// kernel: tpu_custom_call.1
$region0: #{tpu_custom_call.1}
  #allocation0 [shape = 'u32[]', space=smem, size = 0x4, offset = 0x4, fixed_abs, tag = 'smem constant byte address 0x4 - core index']
  #allocation1 [shape = 'u32[144,128]{1,0:T(1,128)}', space=vmem, size = 0x12000, scoped, tag = 'internal scratch']
  %s0 = inlined_call_operand.vmem [shape: f32[200,16], index: 0, kind: input, shape index: {}]
  %s1 = inlined_call_operand.vmem [shape: f32[16,128], index: 1, kind: input, shape index: {}]
  %s2 = inlined_call_operand.vmem [shape: f32[1,128], index: 2, kind: input, shape index: {}]
  %s3 = inlined_call_operand.vmem [shape: f32[128,128], index: 3, kind: input, shape index: {}]
  %s4 = inlined_call_operand.vmem [shape: f32[1,128], index: 4, kind: input, shape index: {}]
  %s5 = inlined_call_operand.hbm [shape: f32[128,128], index: 5, kind: input, shape index: {}]
  %s6 = inlined_call_operand.vmem [shape: f32[1,128], index: 6, kind: input, shape index: {}]
  %s7 = inlined_call_operand.vmem [shape: f32[200,1], index: 7, kind: output, shape index: {}]
  %s8 = sld [smem:[#allocation0]]
  $region113: #{tpu_custom_call.1} parent=0
    _
  %s10 = ssub.s32 1, %s8
  %s11 = scalar_select 0, %s10, %s8
  $region1: #{tpu_custom_call.1} parent=0
    #allocation2 [shape = 'u8[65536]{0}', space=vmem, size = 0x10000, scoped, tag = 'input window, operand 5, single buffered']
    #allocation3 [shape = 's32[2]{0}', space=sflag, size = 0x8, scoped, tag = 'scoped memory for tpu_custom_call.1']
    #allocation4 [shape = 'u8[65536]{0}', space=vmem, size = 0x10000, scoped, tag = 'output window, operand 0']
    %12 = vsyncpa [#allocation3], 0
    loop: start=0, step=1, limit=6
    $region2: #{tpu_custom_call.1} parent=1 // loop_pre_header
      _
    $region3: #{tpu_custom_call.1} parent=1 // loop_header
      %s14 = sphi 0, %s18
      %p15 = scmp.ge.s32.totalorder %s14, 6
      %s24 = sphi 0, %s26
      %s27 = sphi 0, %s24
      %s28 = sphi 0, %s27
      %s44 = sphi 0, %s28
      %s48 = sphi 0, %s48
      %s50 = sphi 0, %s48
      %s51 = sphi 0, %s50
      %s65 = sphi 0, %s51
      %s69 = sphi 0, %s69
      %s71 = sphi 0, %s69
      %s72 = sphi 0, %s71
      %s86 = sphi 0, %s72
      %s90 = sphi 0, %s90
      %s92 = sphi 0, %s90
      %s93 = sphi 0, %s92
      %s107 = sphi 0, %s93
      %s111 = sphi 0, %s111
      %s113 = sphi 0, %s111
      %s114 = sphi 0, %s113
      %s128 = sphi 0, %s114
      %s132 = sphi 0, %s132
      %s134 = sphi 0, %s132
      %s135 = sphi 0, %s134
      %s149 = sphi 0, %s135
      %s153 = sphi 0, %s153
      %s155 = sphi 0, %s153
      %s156 = sphi 0, %s155
      %s170 = sphi 0, %s156
      %s176 = sphi 0, %s178
      %s179 = sphi 0, %s176
      %s180 = sphi 0, %s179
      %s196 = sphi 0, %s180
    $region4: #{tpu_custom_call.1} parent=1 // loop_header_branch
      %17 = sbr.rel (%p15) target = $region8
    $region5: #{tpu_custom_call.1} parent=1 // loop_body
      %s19 = ssub.s32 %s14, 1
      %s20 = ssub.s32 %s14, 2
      %s21 = sadd.s32 %s14, 1
      %s22 = ssub.s32 %s14, %s21
      %p23 = scmp.eq.s32.totalorder %s22, 0
      %s25 = sadd.s32 %s24, 1
      %s26 = scalar_select %p23, %s24, %s25
      %p29 = pneg %p23
      %p30 = scmp.eq.s32.totalorder %s14, 3
      %p31 = por %p29, %p30
      %p32 = scmp.ne.s32.totalorder %s24, %s27
      %p33 = scmp.eq.s32.totalorder %s14, 0
      %p34 = por %p32, %p33
      %p35 = scmp.ne.s32.totalorder %s24, %s27
      %p36 = scmp.eq.s32.totalorder %s19, 3
      %p37 = por %p35, %p36
      %p38 = scmp.ne.s32.totalorder %s27, %s28
      %p39 = scmp.eq.s32.totalorder %s19, 0
      %p40 = por %p38, %p39
      %p41 = scmp.ne.s32.totalorder %s27, %s28
      %p42 = scmp.eq.s32.totalorder %s20, 3
      %p43 = por %p41, %p42
      %p45 = scmp.ne.s32.totalorder %s28, %s44
      %p46 = scmp.eq.s32.totalorder %s20, 0
      %p47 = por %p45, %p46
      %s49 = sadd.s32 %s48, 1
      %p52 = scmp.eq.s32.totalorder %s14, 3
      %p53 = scmp.ne.s32.totalorder %s48, %s50
      %p54 = scmp.eq.s32.totalorder %s14, 0
      %p55 = por %p53, %p54
      %p56 = scmp.ne.s32.totalorder %s48, %s50
      %p57 = scmp.eq.s32.totalorder %s19, 3
      %p58 = por %p56, %p57
      %p59 = scmp.ne.s32.totalorder %s50, %s51
      %p60 = scmp.eq.s32.totalorder %s19, 0
      %p61 = por %p59, %p60
      %p62 = scmp.ne.s32.totalorder %s50, %s51
      %p63 = scmp.eq.s32.totalorder %s20, 3
      %p64 = por %p62, %p63
      %p66 = scmp.ne.s32.totalorder %s51, %s65
      %p67 = scmp.eq.s32.totalorder %s20, 0
      %p68 = por %p66, %p67
      %s70 = sadd.s32 %s69, 1
      %p73 = scmp.eq.s32.totalorder %s14, 3
      %p74 = scmp.ne.s32.totalorder %s69, %s71
      %p75 = scmp.eq.s32.totalorder %s14, 0
      %p76 = por %p74, %p75
      %p77 = scmp.ne.s32.totalorder %s69, %s71
      %p78 = scmp.eq.s32.totalorder %s19, 3
      %p79 = por %p77, %p78
      %p80 = scmp.ne.s32.totalorder %s71, %s72
      %p81 = scmp.eq.s32.totalorder %s19, 0
      %p82 = por %p80, %p81
      %p83 = scmp.ne.s32.totalorder %s71, %s72
      %p84 = scmp.eq.s32.totalorder %s20, 3
      %p85 = por %p83, %p84
      %p87 = scmp.ne.s32.totalorder %s72, %s86
      %p88 = scmp.eq.s32.totalorder %s20, 0
      %p89 = por %p87, %p88
      %s91 = sadd.s32 %s90, 1
      %p94 = scmp.eq.s32.totalorder %s14, 3
      %p95 = scmp.ne.s32.totalorder %s90, %s92
      %p96 = scmp.eq.s32.totalorder %s14, 0
      %p97 = por %p95, %p96
      %p98 = scmp.ne.s32.totalorder %s90, %s92
      %p99 = scmp.eq.s32.totalorder %s19, 3
      %p100 = por %p98, %p99
      %p101 = scmp.ne.s32.totalorder %s92, %s93
      %p102 = scmp.eq.s32.totalorder %s19, 0
      %p103 = por %p101, %p102
      %p104 = scmp.ne.s32.totalorder %s92, %s93
      %p105 = scmp.eq.s32.totalorder %s20, 3
      %p106 = por %p104, %p105
      %p108 = scmp.ne.s32.totalorder %s93, %s107
      %p109 = scmp.eq.s32.totalorder %s20, 0
      %p110 = por %p108, %p109
      %s112 = sadd.s32 %s111, 1
      %p115 = scmp.eq.s32.totalorder %s14, 3
      %p116 = scmp.ne.s32.totalorder %s111, %s113
      %p117 = scmp.eq.s32.totalorder %s14, 0
      %p118 = por %p116, %p117
      %p119 = scmp.ne.s32.totalorder %s111, %s113
      %p120 = scmp.eq.s32.totalorder %s19, 3
      %p121 = por %p119, %p120
      %p122 = scmp.ne.s32.totalorder %s113, %s114
      %p123 = scmp.eq.s32.totalorder %s19, 0
      %p124 = por %p122, %p123
      %p125 = scmp.ne.s32.totalorder %s113, %s114
      %p126 = scmp.eq.s32.totalorder %s20, 3
      %p127 = por %p125, %p126
      %p129 = scmp.ne.s32.totalorder %s114, %s128
      %p130 = scmp.eq.s32.totalorder %s20, 0
      %p131 = por %p129, %p130
      %s133 = sadd.s32 %s132, 1
      %p136 = scmp.eq.s32.totalorder %s14, 3
      %p137 = scmp.ne.s32.totalorder %s132, %s134
      %p138 = scmp.eq.s32.totalorder %s14, 0
      %p139 = por %p137, %p138
      %p140 = scmp.ne.s32.totalorder %s132, %s134
      %p141 = scmp.eq.s32.totalorder %s19, 3
      %p142 = por %p140, %p141
      %p143 = scmp.ne.s32.totalorder %s134, %s135
      %p144 = scmp.eq.s32.totalorder %s19, 0
      %p145 = por %p143, %p144
      %p146 = scmp.ne.s32.totalorder %s134, %s135
      %p147 = scmp.eq.s32.totalorder %s20, 3
      %p148 = por %p146, %p147
      %p150 = scmp.ne.s32.totalorder %s135, %s149
      %p151 = scmp.eq.s32.totalorder %s20, 0
      %p152 = por %p150, %p151
      %s154 = sadd.s32 %s153, 1
      %p157 = scmp.eq.s32.totalorder %s14, 3
      %p158 = scmp.ne.s32.totalorder %s153, %s155
      %p159 = scmp.eq.s32.totalorder %s14, 0
      %p160 = por %p158, %p159
      %p161 = scmp.ne.s32.totalorder %s153, %s155
      %p162 = scmp.eq.s32.totalorder %s19, 3
      %p163 = por %p161, %p162
      %p164 = scmp.ne.s32.totalorder %s155, %s156
      %p165 = scmp.eq.s32.totalorder %s19, 0
      %p166 = por %p164, %p165
      %p167 = scmp.ne.s32.totalorder %s155, %s156
      %p168 = scmp.eq.s32.totalorder %s20, 3
      %p169 = por %p167, %p168
      %p171 = scmp.ne.s32.totalorder %s156, %s170
      %p172 = scmp.eq.s32.totalorder %s20, 0
      %p173 = por %p171, %p172
      %s174 = ssub.s32 %s14, %s21
      %p175 = scmp.eq.s32.totalorder %s174, 0
      %s177 = sadd.s32 %s176, 1
      %s178 = scalar_select %p175, %s176, %s177
      %p181 = pneg %p175
      %p182 = scmp.eq.s32.totalorder %s14, 3
      %p183 = por %p181, %p182
      %p184 = scmp.ne.s32.totalorder %s176, %s179
      %p185 = scmp.eq.s32.totalorder %s14, 0
      %p186 = por %p184, %p185
      %p187 = scmp.ne.s32.totalorder %s176, %s179
      %p188 = scmp.eq.s32.totalorder %s19, 3
      %p189 = por %p187, %p188
      %p190 = scmp.ne.s32.totalorder %s179, %s180
      %p191 = scmp.eq.s32.totalorder %s19, 0
      %p192 = por %p190, %p191
      %p193 = scmp.ne.s32.totalorder %s179, %s180
      %p194 = scmp.eq.s32.totalorder %s20, 3
      %p195 = por %p193, %p194
      %p197 = scmp.ne.s32.totalorder %s180, %s196
      %p198 = scmp.eq.s32.totalorder %s20, 0
      %p199 = por %p197, %p198
      %p200 = scmp.le.s32.totalorder 1, %s14
      %p201 = scmp.lt.s32.totalorder %s14, 5
      %p202 = pnand %p200, %p201
      %p203 = pneg %p202
      // Predicated region
      $region9: #{tpu_custom_call.1} parent=5 // pred_check
        _
      $region10: #{tpu_custom_call.1} parent=5 // pred_check_branch
        %205 = sbr.rel (%p202) target = $region12
      $region11: #{tpu_custom_call.1} parent=5 // pred_region
        %s206 = ssub.s32 %s14, 1
        // Predicated region
        $region13: #{tpu_custom_call.1} parent=11 // pred_check
          %p207 = pneg %p61
        $region14: #{tpu_custom_call.1} parent=11 // pred_check_branch
          %209 = sbr.rel (%p207) target = $region16
        $region15: #{tpu_custom_call.1} parent=11 // pred_region
          _
        $region16: #{tpu_custom_call.1} parent=11 // pred_fallthru
          _
        // Predicated region
        $region17: #{tpu_custom_call.1} parent=11 // pred_check
          %p210 = pneg %p82
        $region18: #{tpu_custom_call.1} parent=11 // pred_check_branch
          %212 = sbr.rel (%p210) target = $region20
        $region19: #{tpu_custom_call.1} parent=11 // pred_region
          _
        $region20: #{tpu_custom_call.1} parent=11 // pred_fallthru
          _
        // Predicated region
        $region21: #{tpu_custom_call.1} parent=11 // pred_check
          %p213 = pneg %p103
        $region22: #{tpu_custom_call.1} parent=11 // pred_check_branch
          %215 = sbr.rel (%p213) target = $region24
        $region23: #{tpu_custom_call.1} parent=11 // pred_region
          _
        $region24: #{tpu_custom_call.1} parent=11 // pred_fallthru
          _
        // Predicated region
        $region25: #{tpu_custom_call.1} parent=11 // pred_check
          %p216 = pneg %p124
        $region26: #{tpu_custom_call.1} parent=11 // pred_check_branch
          %218 = sbr.rel (%p216) target = $region28
        $region27: #{tpu_custom_call.1} parent=11 // pred_region
          _
        $region28: #{tpu_custom_call.1} parent=11 // pred_fallthru
          _
        // Predicated region
        $region29: #{tpu_custom_call.1} parent=11 // pred_check
          %p219 = pneg %p145
        $region30: #{tpu_custom_call.1} parent=11 // pred_check_branch
          %221 = sbr.rel (%p219) target = $region32
        $region31: #{tpu_custom_call.1} parent=11 // pred_region
          %s223 = ssub.s32 2048, 2048
          %224 = vsyncadd [#allocation3], %s223
          %s225 = sshll.u32 [#allocation2], 4
          %s226 = int_to_ptr.vmem [resolvable:$true] %s225
          %231 = dma.hbm_to_vmem [thread:$0]  %s5, 2048, %s226, [#allocation3], 128, 128, 8
        $region32: #{tpu_custom_call.1} parent=11 // pred_fallthru
          _
        // Predicated region
        $region33: #{tpu_custom_call.1} parent=11 // pred_check
          %p232 = pneg %p166
        $region34: #{tpu_custom_call.1} parent=11 // pred_check_branch
          %234 = sbr.rel (%p232) target = $region36
        $region35: #{tpu_custom_call.1} parent=11 // pred_region
          _
        $region36: #{tpu_custom_call.1} parent=11 // pred_fallthru
          _
      $region12: #{tpu_custom_call.1} parent=5 // pred_fallthru
        _
      %p235 = scmp.lt.s32.totalorder %s14, 4
      // Predicated region
      $region37: #{tpu_custom_call.1} parent=5 // pred_check
        %p236 = pneg %p235
      $region38: #{tpu_custom_call.1} parent=5 // pred_check_branch
        %238 = sbr.rel (%p236) target = $region40
      $region39: #{tpu_custom_call.1} parent=5 // pred_region
        // Predicated region
        $region41: #{tpu_custom_call.1} parent=39 // pred_check
          %p239 = pneg %p34
        $region42: #{tpu_custom_call.1} parent=39 // pred_check_branch
          %241 = sbr.rel (%p239) target = $region44
        $region43: #{tpu_custom_call.1} parent=39 // pred_region
          %s242 = smul.u32 8, %s14
          %s243 = ssub.s32 25, %s242
          %p244 = scmp.lt.s32.totalorder %s243, 8
          %s245 = scalar_select %p244, %s243, 8
          %s246 = smul.u32 128, %s245
          %p247 = scmp.lt.s32.totalorder %s242, 24
          %s248 = scalar_select %p247, %s242, 24
          %s249 = smul.addr %s248, 8
          %s250 = scalar_lea.vmem %s0, %s249
          %s251 = smul.u32 8, %s14
          %s252 = ssub.s32 25, %s251
          %p253 = scmp.lt.s32.totalorder %s252, 8
          %s254 = scalar_select %p253, %s252, 8
          %s255 = smul.u32 128, %s254
        $region44: #{tpu_custom_call.1} parent=39 // pred_fallthru
          _
      $region40: #{tpu_custom_call.1} parent=5 // pred_fallthru
        _
      %p256 = scmp.le.s32.totalorder 1, %s14
      %p257 = scmp.lt.s32.totalorder %s14, 5
      %p258 = pnand %p256, %p257
      %p259 = pneg %p258
      // Predicated region
      $region45: #{tpu_custom_call.1} parent=5 // pred_check
        _
      $region46: #{tpu_custom_call.1} parent=5 // pred_check_branch
        %261 = sbr.rel (%p258) target = $region48
      $region47: #{tpu_custom_call.1} parent=5 // pred_region
        %s262 = ssub.s32 %s14, 1
        // Predicated region
        $region49: #{tpu_custom_call.1} parent=47 // pred_check
          %p263 = pneg %p145
        $region50: #{tpu_custom_call.1} parent=47 // pred_check_branch
          %265 = sbr.rel (%p263) target = $region52
        $region51: #{tpu_custom_call.1} parent=47 // pred_region
          %266 = dma.done [#allocation3], 2048
        $region52: #{tpu_custom_call.1} parent=47 // pred_fallthru
          _
        %s267 = smul.u32 8, %s19
        %s268 = ssub.s32 25, %s267
        %p269 = scmp.lt.s32.totalorder %s268, 8
        %s270 = scalar_select %p269, %s268, 8
        %s271 = smul.u32 128, %s270
        %p272 = scmp.lt.s32.totalorder %s267, 24
        %s273 = scalar_select %p272, %s267, 24
        %s274 = smul.addr %s273, 8
        %s275 = scalar_lea.vmem %s0, %s274
        %p276 = pneg %p40
        %p277 = pneg %p37
        %p278 = pneg %p61
        %p279 = pneg %p58
        %p280 = pneg %p82
        %p281 = pneg %p79
        %p282 = pneg %p103
        %p283 = pneg %p100
        %p284 = pneg %p124
        %p285 = pneg %p121
        %p286 = pneg %p145
        %p287 = pneg %p142
        %p288 = pneg %p166
        %p289 = pneg %p163
        %p290 = pneg %p192
        %p291 = pneg %p189
        %s292 = sand.u32 %s179, 1
        %s293 = sand.u32 %s179, 1
        %s294 = smul.addr %s293, 64
        %s295 = scalar_lea.vmem [#allocation4], %s294
        %s296 = smul.u32 8, %s19
        %s297 = ssub.s32 25, %s296
        %p298 = scmp.lt.s32.totalorder %s297, 8
        %s299 = scalar_select %p298, %s297, 8
        %s300 = smul.u32 128, %s299
        %p301 = scmp.lt.s32.totalorder %s296, 24
        %s302 = scalar_select %p301, %s296, 24
        %s303 = smul.addr %s302, 8
        %s304 = scalar_lea.vmem %s0, %s303
        %s305 = smul.u32 8, %s19
        %s306 = ssub.s32 25, %s305
        %p307 = scmp.lt.s32.totalorder %s306, 8
        %s308 = scalar_select %p307, %s306, 8
        %s309 = smul.u32 128, %s308
        %s310 = smul.u32 8, %s19
        %s311 = ssub.s32 25, %s310
        %p312 = scmp.lt.s32.totalorder %s311, 8
        %s313 = scalar_select %p312, %s311, 8
        %s314 = smul.u32 128, %s313
        %v315 = vld [vmem:[%s304] sm:$0xff]
        %v316 = vld [vmem:[%s304 + $0x8] sm:$0xff]
        %v317 = vld [vmem:[%s304 + $0x10] sm:$0xff]
        %v318 = vld [vmem:[%s304 + $0x18] sm:$0xff]
        %v319 = vld [vmem:[%s304 + $0x20] sm:$0xff]
        %v320 = vld [vmem:[%s304 + $0x28] sm:$0xff]
        %v321 = vld [vmem:[%s304 + $0x30] sm:$0xff]
        %v322 = vld [vmem:[%s304 + $0x38] sm:$0xff]
        %v323 = vld [vmem:[%s1] sm:$0xff]
        %v324 = vld [vmem:[%s1 + $0x8] sm:$0xff]
        %v325 = vld [vmem:[%s2] sm:$0x1]
        %v327 = vlaneseq
        %v328 = vshrl.u32 %v327, 7
        %v329 = vsub.s32 0, %v328
        %v330 = vrot.slane %v325, %v329
        %vm332 = vcmask 130048
        %v334 = vsel %vm332, %v315, 0
        %v337 = vsel %vm332, %v316, 0
        %v340 = vsel %vm332, %v317, 0
        %v343 = vsel %vm332, %v318, 0
        %v346 = vsel %vm332, %v319, 0
        %v349 = vsel %vm332, %v320, 0
        %v352 = vsel %vm332, %v321, 0
        %v355 = vsel %vm332, %v322, 0
        %357 = vmatprep.subr.mxu0 0.0
        %358 = vmatpush1.msra.mxu0 %v323
        %359 = vmatprep.subr.mxu0 0.0
        %360 = vmatpush1.msra.mxu0 %v324
        %361 = vmatprep.subr.mxu0 0.0
        %362 = vmatpush1.msra.mxu0 0.0
        %363 = vmatprep.subr.mxu0 0.0
        %364 = vmatpush1.msra.mxu0 0.0
        %365 = vmatprep.subr.mxu0 0.0
        %366 = vmatpush1.msra.mxu0 0.0
        %367 = vmatprep.subr.mxu0 0.0
        %368 = vmatpush1.msra.mxu0 0.0
        %369 = vmatprep.subr.mxu0 0.0
        %370 = vmatpush1.msra.mxu0 0.0
        %371 = vmatprep.subr.mxu0 0.0
        %372 = vmatpush1.msra.mxu0 0.0
        %373 = vmatprep.subr.mxu0 0.0
        %374 = vmatpush1.msra.mxu0 0.0
        %375 = vmatprep.subr.mxu0 0.0
        %376 = vmatpush1.msra.mxu0 0.0
        %377 = vmatprep.subr.mxu0 0.0
        %378 = vmatpush1.msra.mxu0 0.0
        %379 = vmatprep.subr.mxu0 0.0
        %380 = vmatpush1.msra.mxu0 0.0
        %381 = vmatprep.subr.mxu0 0.0
        %382 = vmatpush1.msra.mxu0 0.0
        %383 = vmatprep.subr.mxu0 0.0
        %384 = vmatpush1.msra.mxu0 0.0
        %385 = vmatprep.subr.mxu0 0.0
        %386 = vmatpush1.msra.mxu0 0.0
        %387 = vmatprep.subr.mxu0 0.0
        %388 = vmatpush1.msra.mxu0 0.0
        %389 = vmatprep.subr.mxu0 0.0
        %390 = vmatpush1.msra.mxu0 0.0
        %391 = vmatprep.subr.mxu0 0.0
        %392 = vmatpush1.msra.mxu0 0.0
        %393 = vmatprep.subr.mxu0 0.0
        %394 = vmatpush1.msra.mxu0 0.0
        %395 = vmatprep.subr.mxu0 0.0
        %396 = vmatpush1.msra.mxu0 0.0
        %397 = vmatprep.subr.mxu0 0.0
        %398 = vmatpush1.msra.mxu0 0.0
        %399 = vmatprep.subr.mxu0 0.0
        %400 = vmatpush1.msra.mxu0 0.0
        %401 = vmatprep.subr.mxu0 0.0
        %402 = vmatpush1.msra.mxu0 0.0
        %403 = vmatprep.subr.mxu0 0.0
        %404 = vmatpush1.msra.mxu0 0.0
        %405 = vmatprep.subr.mxu0 0.0
        %406 = vmatpush1.msra.mxu0 0.0
        %407 = vmatprep.subr.mxu0 0.0
        %408 = vmatpush1.msra.mxu0 0.0
        %409 = vmatprep.subr.mxu0 0.0
        %410 = vmatpush1.msra.mxu0 0.0
        %411 = vmatprep.subr.mxu0 0.0
        %412 = vmatpush1.msra.mxu0 0.0
        %413 = vmatprep.subr.mxu0 0.0
        %414 = vmatpush1.msra.mxu0 0.0
        %415 = vmatprep.subr.mxu0 0.0
        %416 = vmatpush1.msra.mxu0 0.0
        %417 = vmatprep.subr.mxu0 0.0
        %418 = vmatpush1.msra.mxu0 0.0
        %419 = vmatprep.subr.mxu0 0.0
        %420 = vmatpush1.msra.mxu0 0.0
        %421 = vmatprep.mubr.f32.mxu0 0.0
        %422 = vmatmul.mubr.f32.gmra.mrb[0].mxu0 %v334
        %v423 = vpop.f32.mrb[0].mxu0
        %v424 = vadd.f32 %v330, %v423
        %v425 = vpop.f32.mrb[0].mxu0
        %426 = vmatprep.mubr.f32.mxu0 0.0
        %427 = vmatmul.mubr.f32.gmra.mrb[0].mxu0 %v337
        %v428 = vpop.f32.mrb[0].mxu0
        %v429 = vadd.f32 %v330, %v428
        %v430 = vpop.f32.mrb[0].mxu0
        %431 = vmatprep.mubr.f32.mxu0 0.0
        %432 = vmatmul.mubr.f32.gmra.mrb[0].mxu0 %v340
        %v433 = vpop.f32.mrb[0].mxu0
        %v434 = vadd.f32 %v330, %v433
        %v435 = vpop.f32.mrb[0].mxu0
        %436 = vmatprep.mubr.f32.mxu0 0.0
        %437 = vmatmul.mubr.f32.gmra.mrb[0].mxu0 %v343
        %v438 = vpop.f32.mrb[0].mxu0
        %v439 = vadd.f32 %v330, %v438
        %v440 = vpop.f32.mrb[0].mxu0
        %441 = vmatprep.mubr.f32.mxu0 0.0
        %442 = vmatmul.mubr.f32.gmra.mrb[0].mxu0 %v346
        %v443 = vpop.f32.mrb[0].mxu0
        %v444 = vadd.f32 %v330, %v443
        %v445 = vpop.f32.mrb[0].mxu0
        %446 = vmatprep.mubr.f32.mxu0 0.0
        %447 = vmatmul.mubr.f32.gmra.mrb[0].mxu0 %v349
        %v448 = vpop.f32.mrb[0].mxu0
        %v449 = vadd.f32 %v330, %v448
        %v450 = vpop.f32.mrb[0].mxu0
        %451 = vmatprep.mubr.f32.mxu0 0.0
        %452 = vmatmul.mubr.f32.gmra.mrb[0].mxu0 %v352
        %v453 = vpop.f32.mrb[0].mxu0
        %v454 = vadd.f32 %v330, %v453
        %v455 = vpop.f32.mrb[0].mxu0
        %456 = vmatprep.mubr.f32.mxu0 0.0
        %457 = vmatmul.mubr.f32.gmra.mrb[0].mxu0 %v355
        %v458 = vpop.f32.mrb[0].mxu0
        %v459 = vadd.f32 %v330, %v458
        %v460 = vpop.f32.mrb[0].mxu0
        %461 = vdwg.mxu0
        %v462 = vmax.f32 %v424, 0.0
        %v463 = vmax.f32 %v429, 0.0
        %v464 = vmax.f32 %v434, 0.0
        %v465 = vmax.f32 %v439, 0.0
        %v466 = vmax.f32 %v444, 0.0
        %v467 = vmax.f32 %v449, 0.0
        %v468 = vmax.f32 %v454, 0.0
        %v469 = vmax.f32 %v459, 0.0
        %v470 = vld [vmem:[%s3] sm:$0xff]
        %v471 = vld [vmem:[%s3 + $0x8] sm:$0xff]
        %v472 = vld [vmem:[%s3 + $0x10] sm:$0xff]
        %v473 = vld [vmem:[%s3 + $0x18] sm:$0xff]
        %v474 = vld [vmem:[%s3 + $0x20] sm:$0xff]
        %v475 = vld [vmem:[%s3 + $0x28] sm:$0xff]
        %v476 = vld [vmem:[%s3 + $0x30] sm:$0xff]
        %v477 = vld [vmem:[%s3 + $0x38] sm:$0xff]
        %v478 = vld [vmem:[%s3 + $0x40] sm:$0xff]
        %v479 = vld [vmem:[%s3 + $0x48] sm:$0xff]
        %v480 = vld [vmem:[%s3 + $0x50] sm:$0xff]
        %v481 = vld [vmem:[%s3 + $0x58] sm:$0xff]
        %v482 = vld [vmem:[%s3 + $0x60] sm:$0xff]
        %v483 = vld [vmem:[%s3 + $0x68] sm:$0xff]
        %v484 = vld [vmem:[%s3 + $0x70] sm:$0xff]
        %v485 = vld [vmem:[%s3 + $0x78] sm:$0xff]
        %v486 = vld [vmem:[%s4] sm:$0x1]
        %v488 = vlaneseq
        %v489 = vshrl.u32 %v488, 7
        %v490 = vsub.s32 0, %v489
        %v491 = vrot.slane %v486, %v490
        %493 = vmatprep.subr.mxu0 0.0
        %494 = vmatpush1.msra.mxu0 %v470
        %495 = vmatprep.subr.mxu0 0.0
        %496 = vmatpush1.msra.mxu0 %v471
        %497 = vmatprep.subr.mxu0 0.0
        %498 = vmatpush1.msra.mxu0 %v472
        %499 = vmatprep.subr.mxu0 0.0
        %500 = vmatpush1.msra.mxu0 %v473
        %501 = vmatprep.subr.mxu0 0.0
        %502 = vmatpush1.msra.mxu0 %v474
        %503 = vmatprep.subr.mxu0 0.0
        %504 = vmatpush1.msra.mxu0 %v475
        %505 = vmatprep.subr.mxu0 0.0
        %506 = vmatpush1.msra.mxu0 %v476
        %507 = vmatprep.subr.mxu0 0.0
        %508 = vmatpush1.msra.mxu0 %v477
        %509 = vmatprep.subr.mxu0 0.0
        %510 = vmatpush1.msra.mxu0 %v478
        %511 = vmatprep.subr.mxu0 0.0
        %512 = vmatpush1.msra.mxu0 %v479
        %513 = vmatprep.subr.mxu0 0.0
        %514 = vmatpush1.msra.mxu0 %v480
        %515 = vmatprep.subr.mxu0 0.0
        %516 = vmatpush1.msra.mxu0 %v481
        %517 = vmatprep.subr.mxu0 0.0
        %518 = vmatpush1.msra.mxu0 %v482
        %519 = vmatprep.subr.mxu0 0.0
        %520 = vmatpush1.msra.mxu0 %v483
        %521 = vmatprep.subr.mxu0 0.0
        %522 = vmatpush1.msra.mxu0 %v484
        %523 = vmatprep.subr.mxu0 0.0
        %524 = vmatpush1.msra.mxu0 %v485
        %525 = vmatprep.subr.mxu0 0.0
        %526 = vmatpush1.msra.mxu0 0.0
        %527 = vmatprep.subr.mxu0 0.0
        %528 = vmatpush1.msra.mxu0 0.0
        %529 = vmatprep.subr.mxu0 0.0
        %530 = vmatpush1.msra.mxu0 0.0
        %531 = vmatprep.subr.mxu0 0.0
        %532 = vmatpush1.msra.mxu0 0.0
        %533 = vmatprep.subr.mxu0 0.0
        %534 = vmatpush1.msra.mxu0 0.0
        %535 = vmatprep.subr.mxu0 0.0
        %536 = vmatpush1.msra.mxu0 0.0
        %537 = vmatprep.subr.mxu0 0.0
        %538 = vmatpush1.msra.mxu0 0.0
        %539 = vmatprep.subr.mxu0 0.0
        %540 = vmatpush1.msra.mxu0 0.0
        %541 = vmatprep.subr.mxu0 0.0
        %542 = vmatpush1.msra.mxu0 0.0
        %543 = vmatprep.subr.mxu0 0.0
        %544 = vmatpush1.msra.mxu0 0.0
        %545 = vmatprep.subr.mxu0 0.0
        %546 = vmatpush1.msra.mxu0 0.0
        %547 = vmatprep.subr.mxu0 0.0
        %548 = vmatpush1.msra.mxu0 0.0
        %549 = vmatprep.subr.mxu0 0.0
        %550 = vmatpush1.msra.mxu0 0.0
        %551 = vmatprep.subr.mxu0 0.0
        %552 = vmatpush1.msra.mxu0 0.0
        %553 = vmatprep.subr.mxu0 0.0
        %554 = vmatpush1.msra.mxu0 0.0
        %555 = vmatprep.subr.mxu0 0.0
        %556 = vmatpush1.msra.mxu0 0.0
        %557 = vmatprep.mubr.f32.mxu0 0.0
        %558 = vmatmul.mubr.f32.gmra.mrb[0].mxu0 %v462
        %v559 = vpop.f32.mrb[0].mxu0
        %v560 = vadd.f32 %v491, %v559
        %v561 = vpop.f32.mrb[0].mxu0
        %562 = vmatprep.mubr.f32.mxu0 0.0
        %563 = vmatmul.mubr.f32.gmra.mrb[0].mxu0 %v463
        %v564 = vpop.f32.mrb[0].mxu0
        %v565 = vadd.f32 %v491, %v564
        %v566 = vpop.f32.mrb[0].mxu0
        %567 = vmatprep.mubr.f32.mxu0 0.0
        %568 = vmatmul.mubr.f32.gmra.mrb[0].mxu0 %v464
        %v569 = vpop.f32.mrb[0].mxu0
        %v570 = vadd.f32 %v491, %v569
        %v571 = vpop.f32.mrb[0].mxu0
        %572 = vmatprep.mubr.f32.mxu0 0.0
        %573 = vmatmul.mubr.f32.gmra.mrb[0].mxu0 %v465
        %v574 = vpop.f32.mrb[0].mxu0
        %v575 = vadd.f32 %v491, %v574
        %v576 = vpop.f32.mrb[0].mxu0
        %577 = vmatprep.mubr.f32.mxu0 0.0
        %578 = vmatmul.mubr.f32.gmra.mrb[0].mxu0 %v466
        %v579 = vpop.f32.mrb[0].mxu0
        %v580 = vadd.f32 %v491, %v579
        %v581 = vpop.f32.mrb[0].mxu0
        %582 = vmatprep.mubr.f32.mxu0 0.0
        %583 = vmatmul.mubr.f32.gmra.mrb[0].mxu0 %v467
        %v584 = vpop.f32.mrb[0].mxu0
        %v585 = vadd.f32 %v491, %v584
        %v586 = vpop.f32.mrb[0].mxu0
        %587 = vmatprep.mubr.f32.mxu0 0.0
        %588 = vmatmul.mubr.f32.gmra.mrb[0].mxu0 %v468
        %v589 = vpop.f32.mrb[0].mxu0
        %v590 = vadd.f32 %v491, %v589
        %v591 = vpop.f32.mrb[0].mxu0
        %592 = vmatprep.mubr.f32.mxu0 0.0
        %593 = vmatmul.mubr.f32.gmra.mrb[0].mxu0 %v469
        %v594 = vpop.f32.mrb[0].mxu0
        %v595 = vadd.f32 %v491, %v594
        %v596 = vpop.f32.mrb[0].mxu0
        %597 = vdwg.mxu0
        %v598 = vmax.f32 %v560, 0.0
        %v599 = vmax.f32 %v565, 0.0
        %v600 = vmax.f32 %v570, 0.0
        %v601 = vmax.f32 %v575, 0.0
        %v602 = vmax.f32 %v580, 0.0
        %v603 = vmax.f32 %v585, 0.0
        %v604 = vmax.f32 %v590, 0.0
        %v605 = vmax.f32 %v595, 0.0
        %v606 = vld [vmem:[#allocation2] sm:$0xff]
        %v607 = vld [vmem:[#allocation2 + $0x8] sm:$0xff]
        %v608 = vld [vmem:[#allocation2 + $0x10] sm:$0xff]
        %v609 = vld [vmem:[#allocation2 + $0x18] sm:$0xff]
        %v610 = vld [vmem:[#allocation2 + $0x20] sm:$0xff]
        %v611 = vld [vmem:[#allocation2 + $0x28] sm:$0xff]
        %v612 = vld [vmem:[#allocation2 + $0x30] sm:$0xff]
        %v613 = vld [vmem:[#allocation2 + $0x38] sm:$0xff]
        %v614 = vld [vmem:[#allocation2 + $0x40] sm:$0xff]
        %v615 = vld [vmem:[#allocation2 + $0x48] sm:$0xff]
        %v616 = vld [vmem:[#allocation2 + $0x50] sm:$0xff]
        %v617 = vld [vmem:[#allocation2 + $0x58] sm:$0xff]
        %v618 = vld [vmem:[#allocation2 + $0x60] sm:$0xff]
        %v619 = vld [vmem:[#allocation2 + $0x68] sm:$0xff]
        %v620 = vld [vmem:[#allocation2 + $0x70] sm:$0xff]
        %v621 = vld [vmem:[#allocation2 + $0x78] sm:$0xff]
        %v622 = vld [vmem:[%s6] sm:$0x1]
        %v624 = vlaneseq
        %v625 = vshrl.u32 %v624, 7
        %v626 = vsub.s32 0, %v625
        %v627 = vrot.slane %v622, %v626
        %629 = vmatprep.subr.mxu0 0.0
        %630 = vmatpush1.msra.mxu0 %v606
        %631 = vmatprep.subr.mxu0 0.0
        %632 = vmatpush1.msra.mxu0 %v607
        %633 = vmatprep.subr.mxu0 0.0
        %634 = vmatpush1.msra.mxu0 %v608
        %635 = vmatprep.subr.mxu0 0.0
        %636 = vmatpush1.msra.mxu0 %v609
        %637 = vmatprep.subr.mxu0 0.0
        %638 = vmatpush1.msra.mxu0 %v610
        %639 = vmatprep.subr.mxu0 0.0
        %640 = vmatpush1.msra.mxu0 %v611
        %641 = vmatprep.subr.mxu0 0.0
        %642 = vmatpush1.msra.mxu0 %v612
        %643 = vmatprep.subr.mxu0 0.0
        %644 = vmatpush1.msra.mxu0 %v613
        %645 = vmatprep.subr.mxu0 0.0
        %646 = vmatpush1.msra.mxu0 %v614
        %647 = vmatprep.subr.mxu0 0.0
        %648 = vmatpush1.msra.mxu0 %v615
        %649 = vmatprep.subr.mxu0 0.0
        %650 = vmatpush1.msra.mxu0 %v616
        %651 = vmatprep.subr.mxu0 0.0
        %652 = vmatpush1.msra.mxu0 %v617
        %653 = vmatprep.subr.mxu0 0.0
        %654 = vmatpush1.msra.mxu0 %v618
        %655 = vmatprep.subr.mxu0 0.0
        %656 = vmatpush1.msra.mxu0 %v619
        %657 = vmatprep.subr.mxu0 0.0
        %658 = vmatpush1.msra.mxu0 %v620
        %659 = vmatprep.subr.mxu0 0.0
        %660 = vmatpush1.msra.mxu0 %v621
        %661 = vmatprep.subr.mxu0 0.0
        %662 = vmatpush1.msra.mxu0 0.0
        %663 = vmatprep.subr.mxu0 0.0
        %664 = vmatpush1.msra.mxu0 0.0
        %665 = vmatprep.subr.mxu0 0.0
        %666 = vmatpush1.msra.mxu0 0.0
        %667 = vmatprep.subr.mxu0 0.0
        %668 = vmatpush1.msra.mxu0 0.0
        %669 = vmatprep.subr.mxu0 0.0
        %670 = vmatpush1.msra.mxu0 0.0
        %671 = vmatprep.subr.mxu0 0.0
        %672 = vmatpush1.msra.mxu0 0.0
        %673 = vmatprep.subr.mxu0 0.0
        %674 = vmatpush1.msra.mxu0 0.0
        %675 = vmatprep.subr.mxu0 0.0
        %676 = vmatpush1.msra.mxu0 0.0
        %677 = vmatprep.subr.mxu0 0.0
        %678 = vmatpush1.msra.mxu0 0.0
        %679 = vmatprep.subr.mxu0 0.0
        %680 = vmatpush1.msra.mxu0 0.0
        %681 = vmatprep.subr.mxu0 0.0
        %682 = vmatpush1.msra.mxu0 0.0
        %683 = vmatprep.subr.mxu0 0.0
        %684 = vmatpush1.msra.mxu0 0.0
        %685 = vmatprep.subr.mxu0 0.0
        %686 = vmatpush1.msra.mxu0 0.0
        %687 = vmatprep.subr.mxu0 0.0
        %688 = vmatpush1.msra.mxu0 0.0
        %689 = vmatprep.subr.mxu0 0.0
        %690 = vmatpush1.msra.mxu0 0.0
        %691 = vmatprep.subr.mxu0 0.0
        %692 = vmatpush1.msra.mxu0 0.0
        %693 = vmatprep.mubr.f32.mxu0 0.0
        %694 = vmatmul.mubr.f32.gmra.mrb[0].mxu0 %v598
        %v695 = vpop.f32.mrb[0].mxu0
        %v696 = vadd.f32 %v627, %v695
        %v697 = vpop.f32.mrb[0].mxu0
        %698 = vmatprep.mubr.f32.mxu0 0.0
        %699 = vmatmul.mubr.f32.gmra.mrb[0].mxu0 %v599
        %v700 = vpop.f32.mrb[0].mxu0
        %v701 = vadd.f32 %v627, %v700
        %v702 = vpop.f32.mrb[0].mxu0
        %703 = vmatprep.mubr.f32.mxu0 0.0
        %704 = vmatmul.mubr.f32.gmra.mrb[0].mxu0 %v600
        %v705 = vpop.f32.mrb[0].mxu0
        %v706 = vadd.f32 %v627, %v705
        %v707 = vpop.f32.mrb[0].mxu0
        %708 = vmatprep.mubr.f32.mxu0 0.0
        %709 = vmatmul.mubr.f32.gmra.mrb[0].mxu0 %v601
        %v710 = vpop.f32.mrb[0].mxu0
        %v711 = vadd.f32 %v627, %v710
        %v712 = vpop.f32.mrb[0].mxu0
        %713 = vmatprep.mubr.f32.mxu0 0.0
        %714 = vmatmul.mubr.f32.gmra.mrb[0].mxu0 %v602
        %v715 = vpop.f32.mrb[0].mxu0
        %v716 = vadd.f32 %v627, %v715
        %v717 = vpop.f32.mrb[0].mxu0
        %718 = vmatprep.mubr.f32.mxu0 0.0
        %719 = vmatmul.mubr.f32.gmra.mrb[0].mxu0 %v603
        %v720 = vpop.f32.mrb[0].mxu0
        %v721 = vadd.f32 %v627, %v720
        %v722 = vpop.f32.mrb[0].mxu0
        %723 = vmatprep.mubr.f32.mxu0 0.0
        %724 = vmatmul.mubr.f32.gmra.mrb[0].mxu0 %v604
        %v725 = vpop.f32.mrb[0].mxu0
        %v726 = vadd.f32 %v627, %v725
        %v727 = vpop.f32.mrb[0].mxu0
        %728 = vmatprep.mubr.f32.mxu0 0.0
        %729 = vmatmul.mubr.f32.gmra.mrb[0].mxu0 %v605
        %v730 = vpop.f32.mrb[0].mxu0
        %v731 = vadd.f32 %v627, %v730
        %v732 = vpop.f32.mrb[0].mxu0
        %733 = vdwg.mxu0
        %vm734 = vcmask 7168
        %735 = vst.msk [vmem:[%s295] sm:$0xff] %vm734, %v696
        %736 = vst.msk [vmem:[%s295 + $0x8] sm:$0xff] %vm734, %v701
        %737 = vst.msk [vmem:[%s295 + $0x10] sm:$0xff] %vm734, %v706
        %738 = vst.msk [vmem:[%s295 + $0x18] sm:$0xff] %vm734, %v711
        %739 = vst.msk [vmem:[%s295 + $0x20] sm:$0xff] %vm734, %v716
        %740 = vst.msk [vmem:[%s295 + $0x28] sm:$0xff] %vm734, %v721
        %741 = vst.msk [vmem:[%s295 + $0x30] sm:$0xff] %vm734, %v726
        %742 = vst.msk [vmem:[%s295 + $0x38] sm:$0xff] %vm734, %v731
        %s743 = sand.u32 %s179, 1
        %s744 = sand.u32 %s179, 1
        %s745 = smul.addr %s744, 64
        %s746 = scalar_lea.vmem [#allocation4], %s745
        // Predicated region
        $region53: #{tpu_custom_call.1} parent=47 // pred_check
          %p747 = pneg %p189
        $region54: #{tpu_custom_call.1} parent=47 // pred_check_branch
          %749 = sbr.rel (%p747) target = $region56
        $region55: #{tpu_custom_call.1} parent=47 // pred_region
          %s750 = smul.u32 8, %s19
          %s751 = ssub.s32 25, %s750
          %p752 = scmp.lt.s32.totalorder %s751, 8
          %s753 = scalar_select %p752, %s751, 8
          %s754 = smul.u32 128, %s753
          %p755 = scmp.ne.s32.totalorder 0, %s754
          %s756 = smul.addr %s750, 8
          %s757 = scalar_lea.vmem %s7, %s756
          // Predicated region
          $region57: #{tpu_custom_call.1} parent=55 // pred_check
            %p758 = pneg %p755
          $region58: #{tpu_custom_call.1} parent=55 // pred_check_branch
            %760 = sbr.rel (%p758) target = $region60
          $region59: #{tpu_custom_call.1} parent=55 // pred_region
            // Predicated region
            $region61: #{tpu_custom_call.1} parent=59 // pred_check
              _
            $region62: #{tpu_custom_call.1} parent=59 // pred_check_branch
              %762 = sbr.rel (0) target = $region64
            $region63: #{tpu_custom_call.1} parent=59 // pred_region
              // Predicated region
              $region83: #{tpu_custom_call.1} parent=63 // pred_check
                _
              $region84: #{tpu_custom_call.1} parent=63 // pred_check_branch
                %825 = sbr.rel (0) target = $region86
              $region85: #{tpu_custom_call.1} parent=63 // pred_region
                %s826 = sshrl.u32 %s753, 3
                // While loop
                $region87: #{tpu_custom_call.1} parent=85 // loop_pre_header
                  _
                $region88: #{tpu_custom_call.1} parent=85 // loop_header
                  %s828 = sphi 0, %s830
                  %p829 = scmp.ge.s32.totalorder %s828, %s826
                  %s833 = sphi 0, %s854
                  %s834 = sphi %s746, %s857
                  %s835 = sphi %s757, %s858
                $region89: #{tpu_custom_call.1} parent=85 // loop_header_branch
                  %832 = sbr.rel (%p829) target = $region93
                $region90: #{tpu_custom_call.1} parent=85 // loop_body
                  %v836 = vld [vmem:[%s834] sm:$0xff]
                  %837 = vst [vmem:[%s835] sm:$0xff] %v836
                  %v838 = vld [vmem:[%s834 + $0x8] sm:$0xff]
                  %839 = vst [vmem:[%s835 + $0x8] sm:$0xff] %v838
                  %v840 = vld [vmem:[%s834 + $0x10] sm:$0xff]
                  %841 = vst [vmem:[%s835 + $0x10] sm:$0xff] %v840
                  %v842 = vld [vmem:[%s834 + $0x18] sm:$0xff]
                  %843 = vst [vmem:[%s835 + $0x18] sm:$0xff] %v842
                  %v844 = vld [vmem:[%s834 + $0x20] sm:$0xff]
                  %845 = vst [vmem:[%s835 + $0x20] sm:$0xff] %v844
                  %v846 = vld [vmem:[%s834 + $0x28] sm:$0xff]
                  %847 = vst [vmem:[%s835 + $0x28] sm:$0xff] %v846
                  %v848 = vld [vmem:[%s834 + $0x30] sm:$0xff]
                  %849 = vst [vmem:[%s835 + $0x30] sm:$0xff] %v848
                  %v850 = vld [vmem:[%s834 + $0x38] sm:$0xff]
                  %851 = vst [vmem:[%s835 + $0x38] sm:$0xff] %v850
                  %s852 = sadd.s32 1, %s833
                  %p853 = scmp.ge.s32.totalorder %s852, %s826
                  %s854 = scalar_select %p853, 0, %s852
                  %s855 = smul.u32 %s854, 64
                  %s856 = smul.u32 %s854, 64
                  %s857 = scalar_lea.vmem %s746, %s855 [#allocation4]
                  %s858 = scalar_lea.vmem %s757, %s856
                $region91: #{tpu_custom_call.1} parent=85 // loop_footer
                  %s830 = sadd.s32 %s828, 1
                $region92: #{tpu_custom_call.1} parent=85 // loop_footer_branch
                  %827 = sbr.rel target = $region88
                $region93: #{tpu_custom_call.1} parent=85 // loop_exit
                  _
                %s859 = sshrl.u32 %s753, 3
                %s860 = sand.u32 %s753, 7
                %s861 = smul.u32 %s859, 8
                %s862 = smul.u32 8, %s861
                %s863 = scalar_lea.vmem %s746, %s862 [#allocation4]
                %s864 = smul.u32 8, %s861
                %s865 = scalar_lea.vmem %s757, %s864
                // While loop
                $region94: #{tpu_custom_call.1} parent=85 // loop_pre_header
                  _
                $region95: #{tpu_custom_call.1} parent=85 // loop_header
                  %s867 = sphi 0, %s869
                  %p868 = scmp.ge.s32.totalorder %s867, %s860
                  %s872 = sphi 0, %s879
                  %s873 = sphi %s863, %s882
                  %s874 = sphi %s865, %s883
                $region96: #{tpu_custom_call.1} parent=85 // loop_header_branch
                  %871 = sbr.rel (%p868) target = $region100
                $region97: #{tpu_custom_call.1} parent=85 // loop_body
                  %v875 = vld [vmem:[%s873] sm:$0xff]
                  %876 = vst [vmem:[%s874] sm:$0xff] %v875
                  %s877 = sadd.s32 1, %s872
                  %p878 = scmp.ge.s32.totalorder %s877, %s860
                  %s879 = scalar_select %p878, 0, %s877
                  %s880 = smul.u32 %s879, 8
                  %s881 = smul.u32 %s879, 8
                  %s882 = scalar_lea.vmem %s863, %s880 [#allocation4]
                  %s883 = scalar_lea.vmem %s865, %s881
                $region98: #{tpu_custom_call.1} parent=85 // loop_footer
                  %s869 = sadd.s32 %s867, 1
                $region99: #{tpu_custom_call.1} parent=85 // loop_footer_branch
                  %866 = sbr.rel target = $region95
                $region100: #{tpu_custom_call.1} parent=85 // loop_exit
                  _
              $region86: #{tpu_custom_call.1} parent=63 // pred_fallthru
                _
              // Predicated region
              $region101: #{tpu_custom_call.1} parent=63 // pred_check
                _
              $region102: #{tpu_custom_call.1} parent=63 // pred_check_branch
                %885 = sbr.rel target = $region104
              $region103: #{tpu_custom_call.1} parent=63 // pred_region
                _
              $region104: #{tpu_custom_call.1} parent=63 // pred_fallthru
                _
            $region64: #{tpu_custom_call.1} parent=59 // pred_fallthru
              _
            // Predicated region
            $region65: #{tpu_custom_call.1} parent=59 // pred_check
              _
            $region66: #{tpu_custom_call.1} parent=59 // pred_check_branch
              %764 = sbr.rel target = $region68
            $region67: #{tpu_custom_call.1} parent=59 // pred_region
              %s766 = sshrl.u32 %s753, 3
              // While loop
              $region69: #{tpu_custom_call.1} parent=67 // loop_pre_header
                _
              $region70: #{tpu_custom_call.1} parent=67 // loop_header
                %s768 = sphi 0, %s770
                %p769 = scmp.ge.s32.totalorder %s768, %s766
                %s773 = sphi 0, %s794
                %s774 = sphi %s746, %s797
                %s775 = sphi %s757, %s798
              $region71: #{tpu_custom_call.1} parent=67 // loop_header_branch
                %772 = sbr.rel (%p769) target = $region75
              $region72: #{tpu_custom_call.1} parent=67 // loop_body
                %v776 = vld [vmem:[%s774] sm:$0xff]
                %777 = vst [vmem:[%s775] sm:$0xff] %v776
                %v778 = vld [vmem:[%s774 + $0x8] sm:$0xff]
                %779 = vst [vmem:[%s775 + $0x8] sm:$0xff] %v778
                %v780 = vld [vmem:[%s774 + $0x10] sm:$0xff]
                %781 = vst [vmem:[%s775 + $0x10] sm:$0xff] %v780
                %v782 = vld [vmem:[%s774 + $0x18] sm:$0xff]
                %783 = vst [vmem:[%s775 + $0x18] sm:$0xff] %v782
                %v784 = vld [vmem:[%s774 + $0x20] sm:$0xff]
                %785 = vst [vmem:[%s775 + $0x20] sm:$0xff] %v784
                %v786 = vld [vmem:[%s774 + $0x28] sm:$0xff]
                %787 = vst [vmem:[%s775 + $0x28] sm:$0xff] %v786
                %v788 = vld [vmem:[%s774 + $0x30] sm:$0xff]
                %789 = vst [vmem:[%s775 + $0x30] sm:$0xff] %v788
                %v790 = vld [vmem:[%s774 + $0x38] sm:$0xff]
                %791 = vst [vmem:[%s775 + $0x38] sm:$0xff] %v790
                %s792 = sadd.s32 1, %s773
                %p793 = scmp.ge.s32.totalorder %s792, %s766
                %s794 = scalar_select %p793, 0, %s792
                %s795 = smul.u32 %s794, 64
                %s796 = smul.u32 %s794, 64
                %s797 = scalar_lea.vmem %s746, %s795 [#allocation4]
                %s798 = scalar_lea.vmem %s757, %s796
              $region73: #{tpu_custom_call.1} parent=67 // loop_footer
                %s770 = sadd.s32 %s768, 1
              $region74: #{tpu_custom_call.1} parent=67 // loop_footer_branch
                %767 = sbr.rel target = $region70
              $region75: #{tpu_custom_call.1} parent=67 // loop_exit
                _
              %s799 = sshrl.u32 %s753, 3
              %s800 = sand.u32 %s753, 7
              %s801 = smul.u32 %s799, 8
              %s802 = smul.u32 8, %s801
              %s803 = scalar_lea.vmem %s746, %s802 [#allocation4]
              %s804 = smul.u32 8, %s801
              %s805 = scalar_lea.vmem %s757, %s804
              // While loop
              $region76: #{tpu_custom_call.1} parent=67 // loop_pre_header
                _
              $region77: #{tpu_custom_call.1} parent=67 // loop_header
                %s807 = sphi 0, %s809
                %p808 = scmp.ge.s32.totalorder %s807, %s800
                %s812 = sphi 0, %s819
                %s813 = sphi %s803, %s822
                %s814 = sphi %s805, %s823
              $region78: #{tpu_custom_call.1} parent=67 // loop_header_branch
                %811 = sbr.rel (%p808) target = $region82
              $region79: #{tpu_custom_call.1} parent=67 // loop_body
                %v815 = vld [vmem:[%s813] sm:$0xff]
                %816 = vst [vmem:[%s814] sm:$0xff] %v815
                %s817 = sadd.s32 1, %s812
                %p818 = scmp.ge.s32.totalorder %s817, %s800
                %s819 = scalar_select %p818, 0, %s817
                %s820 = smul.u32 %s819, 8
                %s821 = smul.u32 %s819, 8
                %s822 = scalar_lea.vmem %s803, %s820 [#allocation4]
                %s823 = scalar_lea.vmem %s805, %s821
              $region80: #{tpu_custom_call.1} parent=67 // loop_footer
                %s809 = sadd.s32 %s807, 1
              $region81: #{tpu_custom_call.1} parent=67 // loop_footer_branch
                %806 = sbr.rel target = $region77
              $region82: #{tpu_custom_call.1} parent=67 // loop_exit
                _
            $region68: #{tpu_custom_call.1} parent=59 // pred_fallthru
              _
          $region60: #{tpu_custom_call.1} parent=55 // pred_fallthru
            _
          %886 = vnop
        $region56: #{tpu_custom_call.1} parent=47 // pred_fallthru
          _
      $region48: #{tpu_custom_call.1} parent=5 // pred_fallthru
        _
      %p887 = scmp.le.s32.totalorder 2, %s14
      // Predicated region
      $region105: #{tpu_custom_call.1} parent=5 // pred_check
        %p888 = pneg %p887
      $region106: #{tpu_custom_call.1} parent=5 // pred_check_branch
        %890 = sbr.rel (%p888) target = $region108
      $region107: #{tpu_custom_call.1} parent=5 // pred_region
        %s891 = ssub.s32 %s14, 2
        // Predicated region
        $region109: #{tpu_custom_call.1} parent=107 // pred_check
          %p892 = pneg %p195
        $region110: #{tpu_custom_call.1} parent=107 // pred_check_branch
          %894 = sbr.rel (%p892) target = $region112
        $region111: #{tpu_custom_call.1} parent=107 // pred_region
          %s895 = sand.u32 %s180, 1
          %s896 = sand.u32 %s180, 1
          %s897 = smul.addr %s896, 64
          %s898 = scalar_lea.vmem [#allocation4], %s897
        $region112: #{tpu_custom_call.1} parent=107 // pred_fallthru
          _
      $region108: #{tpu_custom_call.1} parent=5 // pred_fallthru
        _
    $region6: #{tpu_custom_call.1} parent=1 // loop_footer
      %s18 = sadd.s32 1, %s14
    $region7: #{tpu_custom_call.1} parent=1 // loop_footer_branch
      %13 = sbr.rel target = $region3
    $region8: #{tpu_custom_call.1} parent=1 // loop_exit
      _
    %899 = vsyncpa [#allocation3], 1
    %s900 = scalar_lea.sflag [#allocation3], 1
    %901 = vsyncpa %s900, 1

</llo_original>
